<compile_context>
chip_gen: v5e
topology: v5e:2x2
jax: 0.10.0
libtpu: 0.0.40
codegen_flags: <defaults>
</compile_context>

<pallas_src>
from functools import partial

import jax
import jax.numpy as jnp
from jax.experimental import pallas as pl
from jax.experimental.pallas import tpu as pltpu


# ----------------------------- helpers ---------------------------------------

def _pick_tile(dim, candidates):
    """Largest candidate that evenly divides `dim`, else the full dim."""
    for t in candidates:
        if t <= dim and dim % t == 0:
            return t
    return dim


_VMEM_LIMIT = 48 * 1024 * 1024  # headroom below v7x's 64 MiB physical VMEM


# ----------------------------- QKV projection ---------------------------------

def _matmul_kernel(x_ref, w_ref, o_ref, acc_ref):
    # x: (tm, tk), w: (tn, tk) torch layout -> contract minor dims (no .T)
    @pl.when(pl.program_id(2) == 0)
    def _init():
        acc_ref[...] = jnp.zeros_like(acc_ref)

    acc_ref[...] += jax.lax.dot_general(
        x_ref[...], w_ref[...], (((1,), (1,)), ((), ())),
        preferred_element_type=jnp.float32)

    @pl.when(pl.program_id(2) == pl.num_programs(2) - 1)
    def _finalize():
        o_ref[...] = acc_ref[...].astype(o_ref.dtype)


def linear_no_bias(x2d, w, *, out_dtype=jnp.float32, mxu_dtype=jnp.float32):
    """x2d: (M, Cin); w: (Cout, Cin) torch layout -> (M, Cout)."""
    M, K = x2d.shape
    Cout, K2 = w.shape
    assert K == K2

    x2d = x2d.astype(mxu_dtype)
    w = w.astype(mxu_dtype)

    # 128-aligned tiles fill the v5e 128^2 MXU; larger also OK on v6e/v7x.
    tm = _pick_tile(M, (256, 128, 64, 32, 16, 8))
    tn = _pick_tile(Cout, (512, 256, 128))
    tk = _pick_tile(K, (512, 256, 128))
    grid = (M // tm, Cout // tn, K // tk)

    x_spec = pl.BlockSpec((tm, tk), lambda i, j, k: (i, k))
    w_spec = pl.BlockSpec((tn, tk), lambda i, j, k: (j, k))
    o_spec = pl.BlockSpec((tm, tn), lambda i, j, k: (i, j))

    in_itemsize = jnp.dtype(mxu_dtype).itemsize
    cost = pl.CostEstimate(
        flops=2 * M * K * Cout,
        transcendentals=0,
        bytes_accessed=(M * K + Cout * K) * in_itemsize
        + M * Cout * jnp.dtype(out_dtype).itemsize)

    return pl.pallas_call(
        _matmul_kernel,
        out_shape=jax.ShapeDtypeStruct((M, Cout), out_dtype),
        grid=grid,
        in_specs=[x_spec, w_spec],
        out_specs=o_spec,
        scratch_shapes=[pltpu.VMEM((tm, tn), jnp.float32)],
        compiler_params=pltpu.CompilerParams(
            dimension_semantics=("parallel", "parallel", "arbitrary"),
            vmem_limit_bytes=_VMEM_LIMIT),
        cost_estimate=cost,
    )(x2d, w)


# --------------------- fused attention + output projection --------------------

def _attn_proj_kernel(kv_ref, wp_ref, bp_ref, o_ref, *,
                      num_heads, head_dim, scale, tq, n_q, mxu_dtype):
    """kv_ref: (1, N, 3C) resident block; wp_ref: (C, C); bp_ref: (1, C)."""
    C = num_heads * head_dim

    # Q rows for this query tile come out of the already-resident KV block —
    # no second DMA stream of the same HBM tensor.
    if n_q == 1:
        q_all = kv_ref[0]                                   # (N, 3C) static
    else:
        row0 = pl.multiple_of(pl.program_id(1) * tq, tq)
        q_all = kv_ref[0, pl.ds(row0, tq), :]               # (tq, 3C)

    # Fold the softmax scale into Q once per tile (tq x C multiply).
    q_scaled = (q_all[:, :C].astype(jnp.float32) * scale).astype(mxu_dtype)

    heads_out = []
    for h in range(num_heads):                              # static head loop
        lo = h * head_dim
        q = q_scaled[:, lo:lo + head_dim]                   # (tq, Dh)
        k = kv_ref[0, :, C + lo:C + lo + head_dim]          # (N, Dh) ref view
        v = kv_ref[0, :, 2 * C + lo:2 * C + lo + head_dim]  # (N, Dh) ref view

        # contract minor dims directly (no XLU transpose of K)
        s = jax.lax.dot_general(q, k, (((1,), (1,)), ((), ())),
                                preferred_element_type=jnp.float32)   # (tq, N)
        s = s - jnp.max(s, axis=-1, keepdims=True)
        p = jnp.exp(s)
        p = p * pl.reciprocal(jnp.sum(p, axis=-1, keepdims=True), approx=True)
        heads_out.append(
            jnp.dot(p.astype(mxu_dtype), v, preferred_element_type=jnp.float32))

    # lane-dense (tq, C) head-concat, then fused output projection
    att = jnp.concatenate(heads_out, axis=-1).astype(mxu_dtype)       # (tq, C)
    y = jax.lax.dot_general(att, wp_ref[...], (((1,), (1,)), ((), ())),
                            preferred_element_type=jnp.float32)       # (tq, C)
    o_ref[0] = (y + bp_ref[...].astype(jnp.float32)).astype(o_ref.dtype)


def attention_proj_fused(qkv3, w_proj, b_proj, num_heads, head_dim, scale,
                         compute_dtype, out_dtype=jnp.float32):
    """qkv3: (B, N, 3C) packed QKV -> (B, N, C) final (projected) output."""
    B, N, C3 = qkv3.shape
    C = num_heads * head_dim
    assert C3 == 3 * C

    tq = _pick_tile(N, (256, 128, 64, 32, 16, 8))
    n_q = N // tq

    kernel = partial(_attn_proj_kernel, num_heads=num_heads, head_dim=head_dim,
                     scale=scale, tq=tq, n_q=n_q, mxu_dtype=compute_dtype)

    wp = w_proj.astype(compute_dtype)                    # (C, C) torch layout
    bp = b_proj.astype(jnp.float32).reshape(1, C)

    itemsize = jnp.dtype(compute_dtype).itemsize
    cost = pl.CostEstimate(
        flops=4 * B * N * N * C + 2 * B * N * C * C,
        transcendentals=B * num_heads * N * N,
        bytes_accessed=(B * N * 3 * C + C * C + C) * itemsize
        + B * N * C * jnp.dtype(out_dtype).itemsize)

    return pl.pallas_call(
        kernel,
        out_shape=jax.ShapeDtypeStruct((B, N, C), out_dtype),
        grid=(B, n_q),
        in_specs=[
            # whole-sequence packed QKV: revisited across the qi axis -> one
            # DMA per batch
            pl.BlockSpec((1, N, 3 * C), lambda b, qi: (b, 0, 0)),
            # proj weight / bias: revisited across the whole grid
            pl.BlockSpec((C, C), lambda b, qi: (0, 0)),
            pl.BlockSpec((1, C), lambda b, qi: (0, 0)),
        ],
        out_specs=pl.BlockSpec((1, tq, C), lambda b, qi: (b, qi, 0)),
        compiler_params=pltpu.CompilerParams(
            dimension_semantics=("parallel", "arbitrary"),
            vmem_limit_bytes=_VMEM_LIMIT),
        cost_estimate=cost,
    )(qkv3, wp, bp)


# ----------------------------- forward ---------------------------------------

def attention_forward(x, params, num_heads, *, compute_dtype=jnp.float32):
    """x: (B, N, C) -> (B, N, C). Mirrors Attention.forward with default args.

    compute_dtype=jnp.bfloat16 feeds the MXU bf16 inputs (recommended on
    v6e/v7x); all accumulation and softmax math stays in f32.
    """
    B, N, C = x.shape
    head_dim = C // num_heads
    scale = head_dim ** (-0.5)

    # qkv projection (qkv_bias=False default)
    qkv = linear_no_bias(x.reshape(B * N, C), params["w_qkv"],
                         out_dtype=compute_dtype, mxu_dtype=compute_dtype)
    qkv = qkv.reshape(B, N, 3 * C)

    # q_norm / k_norm are Identity (qk_norm=False); attn/proj dropout p=0 are
    # no-ops. Head split + softmax + (attn @ v) + output projection are fused.
    y = attention_proj_fused(qkv, params["w_proj"], params["b_proj"],
                             num_heads, head_dim, scale, compute_dtype)
    return y  # (B, N, C) f32


# ----------------------------- reference -------------------------------------

def attention_reference(x, params, num_heads):
    B, N, C = x.shape
    head_dim = C // num_heads
    scale = head_dim ** (-0.5)
    qkv = x @ params["w_qkv"].T
    qkv = qkv.reshape(B, N, 3, num_heads, head_dim).transpose(2, 0, 3, 1, 4)
    q, k, v = qkv[0], qkv[1], qkv[2]
    s = jnp.einsum("bhnd,bhmd->bhnm", q, k) * scale
    p = jax.nn.softmax(s, axis=-1)
    o = jnp.einsum("bhnm,bhmd->bhnd", p, v)
    o = o.transpose(0, 2, 1, 3).reshape(B, N, C)
    return o @ params["w_proj"].T + params["b_proj"]


# ----------------------------- main -------------------------------------------

if __name__ == "__main__":
    B, N, C = 2, 8, 32
    num_heads = 4  # head_dim = 8

    key = jax.random.PRNGKey(0)
    kx, kw1, kw2, kb2 = jax.random.split(key, 4)

    x = jax.random.normal(kx, (B, N, C), dtype=jnp.float32)
    params = {
        # nn.Linear(dim, dim*3, bias=False): weight shape (3C, C)
        "w_qkv": jax.random.normal(kw1, (3 * C, C), dtype=jnp.float32) * 0.05,
        # nn.Linear(dim, dim): weight (C, C), bias (C,)
        "w_proj": jax.random.normal(kw2, (C, C), dtype=jnp.float32) * 0.05,
        "b_proj": jax.random.normal(kb2, (C,), dtype=jnp.float32) * 0.05,
    }

    ref = attention_reference(x, params, num_heads)

    # f32 MXU path (accuracy baseline; also the v5e-friendly path)
    out_f32 = jax.block_until_ready(attention_forward(x, params, num_heads))
    assert out_f32.shape == (B, N, C)
    assert jnp.allclose(out_f32, ref, atol=5e-3, rtol=5e-3), "f32 mismatch vs reference"

    # bf16 MXU inputs with f32 accumulation (recommended on v6e/v7x)
    out_bf16 = jax.block_until_ready(
        attention_forward(x, params, num_heads, compute_dtype=jnp.bfloat16))
    assert out_bf16.shape == (B, N, C)
    assert jnp.allclose(out_bf16, ref, atol=5e-2, rtol=5e-2), "bf16 mismatch vs reference"

    print("KERNEL_OK")
</pallas_src>

<mosaic_0001>
module attributes {stable_mosaic.version = 11 : i64} {
  func.func @_matmul_kernel(%arg0: i32, %arg1: i32, %arg2: i32, %arg3: memref<16x32xf32, #tpu.memory_space<vmem>>, %arg4: memref<96x32xf32, #tpu.memory_space<vmem>>, %arg5: memref<16x96xf32, #tpu.memory_space<vmem>>, %arg6: memref<16x96xf32, #tpu.memory_space<vmem>>) attributes {dimension_semantics = [#tpu.dimension_semantics<parallel>, #tpu.dimension_semantics<parallel>, #tpu.dimension_semantics<arbitrary>], iteration_bounds = array<i64: 1, 1, 1>, scalar_prefetch = 0 : i64, scratch_operands = 1 : i64, tpu.core_type = #tpu.core_type<tc>, window_params = [{transform_indices = @transform_0, window_bounds = array<i64: 16, 32>}, {transform_indices = @transform_1, window_bounds = array<i64: 96, 32>}, {transform_indices = @transform_2, window_bounds = array<i64: 16, 96>}]} {
    %c0_i32 = arith.constant 0 : i32
    %0 = arith.cmpi eq, %arg2, %c0_i32 : i32
    %1 = arith.extui %0 : i1 to i32
    %c0_i32_0 = arith.constant 0 : i32
    %2 = arith.cmpi ne, %1, %c0_i32_0 : i32
    scf.if %2 {
      %cst_10 = arith.constant 0.000000e+00 : f32
      %12 = vector.broadcast %cst_10 : f32 to vector<16x96xf32>
      %c0_11 = arith.constant 0 : index
      %c0_12 = arith.constant 0 : index
      %13 = vector.load %arg6[%c0_11, %c0_12] : memref<16x96xf32, #tpu.memory_space<vmem>>, vector<16x96xf32>
      tpu.vector_store %arg6[%c0_11, %c0_12], %12 {strides = array<i32>} : memref<16x96xf32, #tpu.memory_space<vmem>>, vector<16x96xf32>,
    } else {
    }
    %c0 = arith.constant 0 : index
    %c0_1 = arith.constant 0 : index
    %3 = vector.load %arg6[%c0, %c0_1] : memref<16x96xf32, #tpu.memory_space<vmem>>, vector<16x96xf32>
    %c0_2 = arith.constant 0 : index
    %c0_3 = arith.constant 0 : index
    %4 = vector.load %arg3[%c0_2, %c0_3] : memref<16x32xf32, #tpu.memory_space<vmem>>, vector<16x32xf32>
    %c0_4 = arith.constant 0 : index
    %c0_5 = arith.constant 0 : index
    %5 = vector.load %arg4[%c0_4, %c0_5] : memref<96x32xf32, #tpu.memory_space<vmem>>, vector<96x32xf32>
    %cst = arith.constant dense<0.000000e+00> : vector<16x96xf32>
    %6 = tpu.matmul %4, %5, %cst {dimension_numbers = #tpu.dot_dimension_numbers<[1], [1], [0], [0], [0, 0, 1, 0], [], []>} : vector<16x32xf32>, vector<96x32xf32>, vector<16x96xf32> -> vector<16x96xf32>
    %7 = arith.addf %3, %6 : vector<16x96xf32>
    %c0_6 = arith.constant 0 : index
    %c0_7 = arith.constant 0 : index
    %8 = vector.load %arg6[%c0_6, %c0_7] : memref<16x96xf32, #tpu.memory_space<vmem>>, vector<16x96xf32>
    tpu.vector_store %arg6[%c0_6, %c0_7], %7 {strides = array<i32>} : memref<16x96xf32, #tpu.memory_space<vmem>>, vector<16x96xf32>,
    %c0_i32_8 = arith.constant 0 : i32
    %9 = arith.cmpi eq, %arg2, %c0_i32_8 : i32
    %10 = arith.extui %9 : i1 to i32
    %c0_i32_9 = arith.constant 0 : i32
    %11 = arith.cmpi ne, %10, %c0_i32_9 : i32
    scf.if %11 {
      %c0_10 = arith.constant 0 : index
      %c0_11 = arith.constant 0 : index
      %12 = vector.load %arg6[%c0_10, %c0_11] : memref<16x96xf32, #tpu.memory_space<vmem>>, vector<16x96xf32>
      %c0_12 = arith.constant 0 : index
      %c0_13 = arith.constant 0 : index
      %13 = vector.load %arg5[%c0_12, %c0_13] : memref<16x96xf32, #tpu.memory_space<vmem>>, vector<16x96xf32>
      tpu.vector_store %arg5[%c0_12, %c0_13], %12 {strides = array<i32>} : memref<16x96xf32, #tpu.memory_space<vmem>>, vector<16x96xf32>,
    } else {
    }
    return
  }
  func.func @transform_0(%arg0: i32, %arg1: i32, %arg2: i32) -> (i32, i32) {
    %c0_i32 = arith.constant 0 : i32
    return %arg0, %arg2 : i32, i32
  }
  func.func @transform_1(%arg0: i32, %arg1: i32, %arg2: i32) -> (i32, i32) {
    %c0_i32 = arith.constant 0 : i32
    return %arg1, %arg2 : i32, i32
  }
  func.func @transform_2(%arg0: i32, %arg1: i32, %arg2: i32) -> (i32, i32) {
    %c0_i32 = arith.constant 0 : i32
    return %arg0, %arg1 : i32, i32
  }
}

</mosaic_0001>

<llo_original>
// kernel: tpu_custom_call.1
$region0: #{tpu_custom_call.1}
  #allocation0 [shape = 'u32[]', space=smem, size = 0x4, offset = 0x4, fixed_abs, tag = 'smem constant byte address 0x4 - core index']
  #allocation1 [shape = 'u32[72,128]{1,0:T(1,128)}', space=vmem, size = 0x9000, scoped, tag = 'internal scratch']
  #allocation2 [shape = 'f32[16,96]{1,0:T(8,128)}', space=vmem, size = 0x2000, scoped, tag = 'scratch operand']
  %s0 = inlined_call_operand.vmem [shape: f32[16,32], index: 0, kind: input, shape index: {}]
  %s1 = inlined_call_operand.vmem [shape: f32[96,32], index: 1, kind: input, shape index: {}]
  %s2 = inlined_call_operand.hbm [shape: f32[16,96], index: 2, kind: output, shape index: {}]
  %s3 = sld [smem:[#allocation0]]
  $region26: #{tpu_custom_call.1} parent=0
    _
  %s5 = ssub.s32 1, %s3
  %s6 = scalar_select 0, %s5, %s3
  $region1: #{tpu_custom_call.1} parent=0
    #allocation3 [shape = 'u8[8192]{0}', space=vmem, size = 0x2000, scoped, tag = 'output window, operand 0, single buffered']
    #allocation4 [shape = 's32[1]{0}', space=sflag, size = 0x4, scoped, tag = 'scoped memory for tpu_custom_call.1']
    %7 = vsyncpa [#allocation4], 0
    // Predicated region
    $region2: #{tpu_custom_call.1} parent=1 // pred_check
      _
    $region3: #{tpu_custom_call.1} parent=1 // pred_check_branch
      %9 = sbr.rel (0) target = $region5
    $region4: #{tpu_custom_call.1} parent=1 // pred_region
      _
    $region5: #{tpu_custom_call.1} parent=1 // pred_fallthru
      _
    // Predicated region
    $region6: #{tpu_custom_call.1} parent=1 // pred_check
      _
    $region7: #{tpu_custom_call.1} parent=1 // pred_check_branch
      %11 = sbr.rel (0) target = $region9
    $region8: #{tpu_custom_call.1} parent=1 // pred_region
      _
    $region9: #{tpu_custom_call.1} parent=1 // pred_fallthru
      _
    %p12 = scmp.eq.s32.totalorder 0, 0
    // Predicated region
    $region10: #{tpu_custom_call.1} parent=1 // pred_check
      %p13 = pneg %p12
    $region11: #{tpu_custom_call.1} parent=1 // pred_check_branch
      %15 = sbr.rel (%p13) target = $region13
    $region12: #{tpu_custom_call.1} parent=1 // pred_region
      %vm16 = vcmask 785408
      %17 = vst.msk [vmem:[#allocation2] sm:$0xff] %vm16, 0.0
      %18 = vst.msk [vmem:[#allocation2 + $0x8] sm:$0xff] %vm16, 0.0
    $region13: #{tpu_custom_call.1} parent=1 // pred_fallthru
      _
    %v19 = vld [vmem:[#allocation2] sm:$0xff]
    %v20 = vld [vmem:[#allocation2 + $0x8] sm:$0xff]
    %v21 = vld [vmem:[%s0] sm:$0xff]
    %v22 = vld [vmem:[%s0 + $0x8] sm:$0xff]
    %v23 = vld [vmem:[%s1] sm:$0xff]
    %v24 = vld [vmem:[%s1 + $0x8] sm:$0xff]
    %v25 = vld [vmem:[%s1 + $0x10] sm:$0xff]
    %v26 = vld [vmem:[%s1 + $0x18] sm:$0xff]
    %v27 = vld [vmem:[%s1 + $0x20] sm:$0xff]
    %v28 = vld [vmem:[%s1 + $0x28] sm:$0xff]
    %v29 = vld [vmem:[%s1 + $0x30] sm:$0xff]
    %v30 = vld [vmem:[%s1 + $0x38] sm:$0xff]
    %v31 = vld [vmem:[%s1 + $0x40] sm:$0xff]
    %v32 = vld [vmem:[%s1 + $0x48] sm:$0xff]
    %v33 = vld [vmem:[%s1 + $0x50] sm:$0xff]
    %v34 = vld [vmem:[%s1 + $0x58] sm:$0xff]
    %vm35 = vcmask 261120
    %v37 = vsel %vm35, %v21, 0
    %v40 = vsel %vm35, %v22, 0
    %v43 = vsel %vm35, %v23, 0
    %v46 = vsel %vm35, %v24, 0
    %v49 = vsel %vm35, %v25, 0
    %v52 = vsel %vm35, %v26, 0
    %v55 = vsel %vm35, %v27, 0
    %v58 = vsel %vm35, %v28, 0
    %v61 = vsel %vm35, %v29, 0
    %v64 = vsel %vm35, %v30, 0
    %v67 = vsel %vm35, %v31, 0
    %v70 = vsel %vm35, %v32, 0
    %v73 = vsel %vm35, %v33, 0
    %v76 = vsel %vm35, %v34, 0
    %78 = vmatpush.xpose.msra.mxu0 0.0
    %79 = vmatpush.xpose.msra.mxu0 0.0
    %80 = vmatpush.xpose.msra.mxu0 0.0
    %81 = vmatpush.xpose.msra.mxu0 0.0
    %82 = vmatpush.xpose.msra.mxu0 %v76
    %83 = vmatpush.xpose.msra.mxu0 %v73
    %84 = vmatpush.xpose.msra.mxu0 %v70
    %85 = vmatpush.xpose.msra.mxu0 %v67
    %86 = vmatpush.xpose.msra.mxu0 %v64
    %87 = vmatpush.xpose.msra.mxu0 %v61
    %88 = vmatpush.xpose.msra.mxu0 %v58
    %89 = vmatpush.xpose.msra.mxu0 %v55
    %90 = vmatpush.xpose.msra.mxu0 %v52
    %91 = vmatpush.xpose.msra.mxu0 %v49
    %92 = vmatpush.xpose.msra.mxu0 %v46
    %93 = vmatpush.xpose.msra.mxu0 %v43
    %94 = vmatmul.f32.gmra.mxu0 %v37
    %v95 = vpop.f32.mrf.mxu0
    %v96 = vadd.f32 0.0, %v95
    %97 = vmatmul.f32.gmra.mxu0 %v40
    %v98 = vpop.f32.mrf.mxu0
    %v99 = vadd.f32 0.0, %v98
    %100 = vdwg.mxu0
    %v101 = vadd.f32 %v19, %v96
    %v102 = vadd.f32 %v20, %v99
    %vm103 = vcmask 785408
    %104 = vst.msk [vmem:[#allocation2] sm:$0xff] %vm103, %v101
    %105 = vst.msk [vmem:[#allocation2 + $0x8] sm:$0xff] %vm103, %v102
    // Predicated region
    $region14: #{tpu_custom_call.1} parent=1 // pred_check
      %p106 = pneg %p12
    $region15: #{tpu_custom_call.1} parent=1 // pred_check_branch
      %108 = sbr.rel (%p106) target = $region17
    $region16: #{tpu_custom_call.1} parent=1 // pred_region
      %v109 = vld [vmem:[#allocation2] sm:$0xff]
      %v110 = vld [vmem:[#allocation2 + $0x8] sm:$0xff]
      %111 = vst.msk [vmem:[#allocation3] sm:$0xff] %vm103, %v109
      %112 = vst.msk [vmem:[#allocation3 + $0x8] sm:$0xff] %vm103, %v110
    $region17: #{tpu_custom_call.1} parent=1 // pred_fallthru
      _
    // Predicated region
    $region18: #{tpu_custom_call.1} parent=1 // pred_check
      _
    $region19: #{tpu_custom_call.1} parent=1 // pred_check_branch
      %114 = sbr.rel (0) target = $region21
    $region20: #{tpu_custom_call.1} parent=1 // pred_region
      %116 = vsyncadd [#allocation4], 0
      %s117 = sshll.u32 [#allocation3], 4
      %s118 = int_to_ptr.vmem [resolvable:$true] %s117
      %s119 = sshll.u32 %s2, 4
      %s120 = int_to_ptr.hbm [resolvable:$true] %s119
      %125 = dma.vmem_to_hbm [thread:$0]  %s118, 256, %s120, [#allocation4], 128, 128, 8
    $region21: #{tpu_custom_call.1} parent=1 // pred_fallthru
      _
    // Predicated region
    $region22: #{tpu_custom_call.1} parent=1 // pred_check
      _
    $region23: #{tpu_custom_call.1} parent=1 // pred_check_branch
      %127 = sbr.rel (0) target = $region25
    $region24: #{tpu_custom_call.1} parent=1 // pred_region
      %129 = dma.done [#allocation4], 256
    $region25: #{tpu_custom_call.1} parent=1 // pred_fallthru
      _
    %130 = vsyncpa [#allocation4], 1

</llo_original>
